<compile_context>
chip_gen: v5e
topology: v5e:2x2
jax: 0.10.0
libtpu: 0.0.40
codegen_flags: <defaults>
</compile_context>

<pallas_src>
import functools

import jax
import jax.numpy as jnp
from jax.experimental import pallas as pl
from jax.experimental.pallas import tpu as pltpu


def _grad_loss_kernel(x_ref, m_ref, part_ref, *, penalty: str, shifts):
    """One batch-block: three rolled neighbour diffs, masked, partial-summed.

    x_ref:    (Bt, L) input block (native dtype; cast to f32 here).
    m_ref:    (3, L)  f32 validity masks (VMEM-resident, constant over grid).
    part_ref: (1, 3)  f32 SMEM partial sums for this block (dx, dy, dz order).
    """
    x = x_ref[...].astype(jnp.float32)               # (Bt, L)
    L = x.shape[1]

    for i, sh in enumerate(shifts):
        sh = sh % L
        if sh == 0:
            # Degenerate axis of size 1: no valid pairs for this diff.
            part_ref[0, i] = jnp.float32(0.0)
            continue
        # roll(x, L - sh) pairs lane j with lane (j + sh) % L.  Wrapped lanes
        # and cross-boundary pairs are zeroed by the precomputed mask row.
        nxt = pltpu.roll(x, L - sh, axis=1)          # XLU slot; VPU stays free
        d = nxt - x
        p = d * d if penalty == "l2" else jnp.abs(d)
        p = p * m_ref[i : i + 1, :]                  # (1, L) mask bcast over Bt
        # Two-stage reduction: vreg adds down the sublane axis first, then one
        # cross-lane reduce of a single row (minimal XLU pressure).
        col = jnp.sum(p, axis=0, keepdims=True)      # (1, L)
        part_ref[0, i] = jnp.sum(col)


def gradient_loss(s, penalty: str = "l2"):
    """Pallas TPU implementation of the PyTorch `gradient_loss.forward`."""
    N, C, D, H, W = s.shape
    B, HW = N * C, H * W
    L = D * HW
    x2 = s.reshape(B, L)                             # contiguous reshape: free

    # Precomputed pair-validity masks, one row per diff (dx/dy/dz order).
    # They also zero the roll wrap-around lanes, so the kernel needs no
    # iota/mod integer work at all.
    j = jnp.arange(L, dtype=jnp.int32)
    masks = jnp.stack(
        [
            (j % HW) < (H - 1) * W,                  # dx: H-neighbour (shift W)
            j < (L - HW),                            # dy: D-neighbour (shift H*W)
            (j % W) != (W - 1),                      # dz: W-neighbour (shift 1)
        ]
    ).astype(jnp.float32)                            # (3, L)

    # Generation-aware block sizing: v7x has 64 MiB VMEM, v5e/v6e 128 MiB.
    try:
        vmem_cap = int(pltpu.get_tpu_info().vmem_capacity_bytes)
    except Exception:                                # conservative (v7x) default
        vmem_cap = 64 << 20
    budget = max(1 << 20, min(4 << 20, vmem_cap // 24))   # f32 bytes per block
    vmem_limit = int(max(32 << 20, min(vmem_cap * 3 // 4, 64 << 20)))

    itemsize = jnp.dtype(s.dtype).itemsize
    sub = {4: 8, 2: 16, 1: 32}.get(itemsize, 8)      # sublane tile for dtype
    row_f32 = L * 4
    cap_rows = max(sub, ((budget // row_f32) // sub) * sub)

    if B % sub == 0:
        # Bt = sublane-aligned divisor of B (no jnp.pad copy, no ragged block)
        # that fits the VMEM budget while keeping >= min(8, B/sub) grid steps
        # so the DMA pipeline (and the second v7x TensorCore) stays busy.
        q = B // sub
        target_grid = min(8, q)
        cap_d = max(1, min(cap_rows // sub, q // target_grid))
        d_best = max(d for d in range(1, cap_d + 1) if q % d == 0)
        Bt = sub * d_best
    else:
        # TODO(synk): non-sublane-aligned B falls back to a single full-B block;
        # add a D-axis tile with an H*W-element halo if B*L ever exceeds VMEM.
        Bt = B
    grid = B // Bt

    partials = pl.pallas_call(
        functools.partial(_grad_loss_kernel, penalty=penalty, shifts=(W, HW, 1)),
        out_shape=jax.ShapeDtypeStruct((grid, 3), jnp.float32),
        grid=(grid,),
        in_specs=[
            pl.BlockSpec((Bt, L), lambda b: (b, 0)),
            pl.BlockSpec((3, L), lambda b: (0, 0)),  # constant block: no re-DMA
        ],
        out_specs=pl.BlockSpec((1, 3), lambda b: (b, 0), memory_space=pltpu.SMEM),
        compiler_params=pltpu.CompilerParams(
            dimension_semantics=("parallel",),
            vmem_limit_bytes=vmem_limit,
        ),
    )(x2, masks)

    totals = jnp.sum(partials, axis=0)               # (3,) global sums
    n_dx = B * D * (H - 1) * W
    n_dy = B * (D - 1) * H * W
    n_dz = B * D * H * (W - 1)
    # NOTE: a spatial dim of size 1 gives a zero count -> NaN, exactly like the
    # torch reference (mean of an empty diff).
    return (totals[0] / n_dx + totals[1] / n_dy + totals[2] / n_dz) / jnp.float32(3.0)


def _reference(s, penalty: str = "l2"):
    s = s.astype(jnp.float32)
    dy = jnp.abs(s[:, :, 1:, :, :] - s[:, :, :-1, :, :])
    dx = jnp.abs(s[:, :, :, 1:, :] - s[:, :, :, :-1, :])
    dz = jnp.abs(s[:, :, :, :, 1:] - s[:, :, :, :, :-1])
    if penalty == "l2":
        dy, dx, dz = dy * dy, dx * dx, dz * dz
    return (jnp.mean(dx) + jnp.mean(dy) + jnp.mean(dz)) / 3.0


if __name__ == "__main__":
    key = jax.random.PRNGKey(0)
    # Small 5-D input consistent with the module: (N, C, D, H, W)
    s = jax.random.normal(key, (2, 4, 8, 8, 8), dtype=jnp.float32)

    out = gradient_loss(s, penalty="l2")
    jax.block_until_ready(out)
    ref = _reference(s, penalty="l2")
    assert jnp.allclose(out, ref, rtol=1e-5, atol=1e-5), (out, ref)

    # l1 path
    out_l1 = gradient_loss(s, penalty="l1")
    jax.block_until_ready(out_l1)
    assert jnp.allclose(out_l1, _reference(s, "l1"), rtol=1e-5, atol=1e-5)

    # native bf16 input path (no wrapper upcast; f32 math inside the kernel)
    s_bf = s.astype(jnp.bfloat16)
    out_bf = gradient_loss(s_bf, penalty="l2")
    jax.block_until_ready(out_bf)
    assert jnp.allclose(out_bf, _reference(s_bf, "l2"), rtol=1e-4, atol=1e-4)

    print("KERNEL_OK")
</pallas_src>

<mosaic_0001>
module attributes {stable_mosaic.version = 11 : i64} {
  func.func @_grad_loss_kernel(%arg0: i32, %arg1: memref<8x512xf32, #tpu.memory_space<vmem>>, %arg2: memref<3x512xf32, #tpu.memory_space<vmem>>, %arg3: memref<1x3xf32, #tpu.memory_space<smem>>) attributes {dimension_semantics = [#tpu.dimension_semantics<parallel>], iteration_bounds = array<i64: 1>, scalar_prefetch = 0 : i64, scratch_operands = 0 : i64, tpu.core_type = #tpu.core_type<tc>, window_params = [{transform_indices = @transform_0, window_bounds = array<i64: 8, 512>}, {pipeline_mode = #tpu.pipeline_mode<synchronous>, transform_indices = @transform_1, window_bounds = array<i64: 3, 512>}, {transform_indices = @transform_2, window_bounds = array<i64: 1, 3>}]} {
    %c0 = arith.constant 0 : index
    %c0_0 = arith.constant 0 : index
    %0 = vector.load %arg1[%c0, %c0_0] : memref<8x512xf32, #tpu.memory_space<vmem>>, vector<8x512xf32>
    %c504_i32 = arith.constant 504 : i32
    %1 = tpu.dynamic_rotate %0 by %c504_i32 dim 1 : vector<8x512xf32>, i32 -> vector<8x512xf32>
    %2 = arith.subf %1, %0 : vector<8x512xf32>
    %3 = arith.mulf %2, %2 : vector<8x512xf32>
    %c0_1 = arith.constant 0 : index
    %c0_2 = arith.constant 0 : index
    %4 = vector.load %arg2[%c0_1, %c0_2] : memref<3x512xf32, #tpu.memory_space<vmem>>, vector<1x512xf32>
    %5 = vector.broadcast %4 : vector<1x512xf32> to vector<8x512xf32>
    %6 = arith.mulf %3, %5 : vector<8x512xf32>
    %cst = arith.constant dense<0.000000e+00> : vector<512xf32>
    %7 = vector.multi_reduction <add>, %6, %cst [0] : vector<8x512xf32> to vector<512xf32>
    %8 = vector.shape_cast %7 : vector<512xf32> to vector<1x512xf32>
    %9 = vector.shape_cast %8 : vector<1x512xf32> to vector<1x1x512xf32>
    %cst_3 = arith.constant dense<0.000000e+00> : vector<1xf32>
    %10 = vector.multi_reduction <add>, %9, %cst_3 [1, 2] : vector<1x1x512xf32> to vector<1xf32>
    %11 = vector.shape_cast %10 : vector<1xf32> to vector<1x1x1xf32>
    %12 = vector.extract %11[0, 0, 0] : f32 from vector<1x1x1xf32>
    %c0_4 = arith.constant 0 : index
    %c0_5 = arith.constant 0 : index
    %13 = memref.load %arg3[%c0_4, %c0_5] : memref<1x3xf32, #tpu.memory_space<smem>>
    memref.store %12, %arg3[%c0_4, %c0_5] : memref<1x3xf32, #tpu.memory_space<smem>>
    %c448_i32 = arith.constant 448 : i32
    %14 = tpu.dynamic_rotate %0 by %c448_i32 dim 1 : vector<8x512xf32>, i32 -> vector<8x512xf32>
    %15 = arith.subf %14, %0 : vector<8x512xf32>
    %16 = arith.mulf %15, %15 : vector<8x512xf32>
    %c1 = arith.constant 1 : index
    %c0_6 = arith.constant 0 : index
    %17 = vector.load %arg2[%c1, %c0_6] : memref<3x512xf32, #tpu.memory_space<vmem>>, vector<1x512xf32>
    %18 = vector.broadcast %17 : vector<1x512xf32> to vector<8x512xf32>
    %19 = arith.mulf %16, %18 : vector<8x512xf32>
    %cst_7 = arith.constant dense<0.000000e+00> : vector<512xf32>
    %20 = vector.multi_reduction <add>, %19, %cst_7 [0] : vector<8x512xf32> to vector<512xf32>
    %21 = vector.shape_cast %20 : vector<512xf32> to vector<1x512xf32>
    %22 = vector.shape_cast %21 : vector<1x512xf32> to vector<1x1x512xf32>
    %cst_8 = arith.constant dense<0.000000e+00> : vector<1xf32>
    %23 = vector.multi_reduction <add>, %22, %cst_8 [1, 2] : vector<1x1x512xf32> to vector<1xf32>
    %24 = vector.shape_cast %23 : vector<1xf32> to vector<1x1x1xf32>
    %25 = vector.extract %24[0, 0, 0] : f32 from vector<1x1x1xf32>
    %c0_9 = arith.constant 0 : index
    %c1_10 = arith.constant 1 : index
    %26 = memref.load %arg3[%c0_9, %c1_10] : memref<1x3xf32, #tpu.memory_space<smem>>
    memref.store %25, %arg3[%c0_9, %c1_10] : memref<1x3xf32, #tpu.memory_space<smem>>
    %c511_i32 = arith.constant 511 : i32
    %27 = tpu.dynamic_rotate %0 by %c511_i32 dim 1 : vector<8x512xf32>, i32 -> vector<8x512xf32>
    %28 = arith.subf %27, %0 : vector<8x512xf32>
    %29 = arith.mulf %28, %28 : vector<8x512xf32>
    %c2 = arith.constant 2 : index
    %c0_11 = arith.constant 0 : index
    %30 = vector.load %arg2[%c2, %c0_11] : memref<3x512xf32, #tpu.memory_space<vmem>>, vector<1x512xf32>
    %31 = vector.broadcast %30 : vector<1x512xf32> to vector<8x512xf32>
    %32 = arith.mulf %29, %31 : vector<8x512xf32>
    %cst_12 = arith.constant dense<0.000000e+00> : vector<512xf32>
    %33 = vector.multi_reduction <add>, %32, %cst_12 [0] : vector<8x512xf32> to vector<512xf32>
    %34 = vector.shape_cast %33 : vector<512xf32> to vector<1x512xf32>
    %35 = vector.shape_cast %34 : vector<1x512xf32> to vector<1x1x512xf32>
    %cst_13 = arith.constant dense<0.000000e+00> : vector<1xf32>
    %36 = vector.multi_reduction <add>, %35, %cst_13 [1, 2] : vector<1x1x512xf32> to vector<1xf32>
    %37 = vector.shape_cast %36 : vector<1xf32> to vector<1x1x1xf32>
    %38 = vector.extract %37[0, 0, 0] : f32 from vector<1x1x1xf32>
    %c0_14 = arith.constant 0 : index
    %c2_15 = arith.constant 2 : index
    %39 = memref.load %arg3[%c0_14, %c2_15] : memref<1x3xf32, #tpu.memory_space<smem>>
    memref.store %38, %arg3[%c0_14, %c2_15] : memref<1x3xf32, #tpu.memory_space<smem>>
    return
  }
  func.func @transform_0(%arg0: i32) -> (i32, i32) {
    %c0_i32 = arith.constant 0 : i32
    %c0_i32_0 = arith.constant 0 : i32
    return %arg0, %c0_i32 : i32, i32
  }
  func.func @transform_1(%arg0: i32) -> (i32, i32) {
    %c0_i32 = arith.constant 0 : i32
    %c0_i32_0 = arith.constant 0 : i32
    %c0_i32_1 = arith.constant 0 : i32
    return %c0_i32, %c0_i32_0 : i32, i32
  }
  func.func @transform_2(%arg0: i32) -> (i32, i32) {
    %c0_i32 = arith.constant 0 : i32
    %c0_i32_0 = arith.constant 0 : i32
    return %arg0, %c0_i32 : i32, i32
  }
}

</mosaic_0001>

<llo_original>
// kernel: tpu_custom_call.1
$region0: #{tpu_custom_call.1}
  #allocation0 [shape = 'u32[]', space=smem, size = 0x4, offset = 0x4, fixed_abs, tag = 'smem constant byte address 0x4 - core index']
  #allocation1 [shape = 'u32[72,128]{1,0:T(1,128)}', space=vmem, size = 0x9000, scoped, tag = 'internal scratch']
  %s0 = inlined_call_operand.hbm [shape: f32[8,512], index: 0, kind: input, shape index: {}]
  %s1 = inlined_call_operand.hbm [shape: f32[3,512], index: 1, kind: input, shape index: {}]
  %s2 = inlined_call_operand.hbm [shape: f32[1,3], index: 2, kind: output, shape index: {}]
  %s3 = sld [smem:[#allocation0]]
  $region26: #{tpu_custom_call.1} parent=0
    _
  %s5 = ssub.s32 1, %s3
  %s6 = scalar_select 0, %s5, %s3
  $region1: #{tpu_custom_call.1} parent=0
    #allocation2 [shape = 'u8[16384]{0}', space=vmem, size = 0x4000, scoped, tag = 'input window, operand 0, single buffered']
    #allocation3 [shape = 's32[1]{0}', space=sflag, size = 0x4, scoped, tag = 'scoped memory for tpu_custom_call.1']
    #allocation4 [shape = 's32[1]{0}', space=sflag, size = 0x4, scoped, tag = 'scoped memory for tpu_custom_call.1']
    #allocation5 [shape = 'u8[8192]{0}', space=vmem, size = 0x2000, scoped, tag = 'input window, operand 1, single buffered']
    #allocation6 [shape = 's32[1]{0}', space=sflag, size = 0x4, scoped, tag = 'scoped memory for tpu_custom_call.1']
    #allocation7 [shape = 'u8[512]{0}', space=smem, size = 0x200, scoped, tag = 'output window, operand 0, single buffered']
    %7 = vsyncpa [#allocation3], 0
    %8 = vsyncpa [#allocation6], 0
    %9 = vsyncpa [#allocation4], 0
    // Predicated region
    $region2: #{tpu_custom_call.1} parent=1 // pred_check
      _
    $region3: #{tpu_custom_call.1} parent=1 // pred_check_branch
      %11 = sbr.rel (0) target = $region5
    $region4: #{tpu_custom_call.1} parent=1 // pred_region
      %13 = vsyncadd [#allocation3], 0
      %s15 = sshll.u32 %s0, 4
      %s16 = int_to_ptr.hbm [resolvable:$true] %s15
      %s17 = sshll.u32 [#allocation2], 4
      %s18 = int_to_ptr.vmem [resolvable:$true] %s17
      %20 = dma.hbm_to_vmem [thread:$0]  %s16, 512, %s18, [#allocation3]
    $region5: #{tpu_custom_call.1} parent=1 // pred_fallthru
      _
    // Predicated region
    $region6: #{tpu_custom_call.1} parent=1 // pred_check
      _
    $region7: #{tpu_custom_call.1} parent=1 // pred_check_branch
      %22 = sbr.rel (0) target = $region9
    $region8: #{tpu_custom_call.1} parent=1 // pred_region
      %24 = vsyncadd [#allocation6], 0
      %s26 = sshll.u32 %s1, 4
      %s27 = int_to_ptr.hbm [resolvable:$true] %s26
      %s28 = sshll.u32 [#allocation5], 4
      %s29 = int_to_ptr.vmem [resolvable:$true] %s28
      %31 = dma.hbm_to_vmem [thread:$0]  %s27, 256, %s29, [#allocation6]
    $region9: #{tpu_custom_call.1} parent=1 // pred_fallthru
      _
    // Predicated region
    $region10: #{tpu_custom_call.1} parent=1 // pred_check
      _
    $region11: #{tpu_custom_call.1} parent=1 // pred_check_branch
      %33 = sbr.rel (0) target = $region13
    $region12: #{tpu_custom_call.1} parent=1 // pred_region
      %35 = dma.done [#allocation3], 512
    $region13: #{tpu_custom_call.1} parent=1 // pred_fallthru
      _
    // Predicated region
    $region14: #{tpu_custom_call.1} parent=1 // pred_check
      _
    $region15: #{tpu_custom_call.1} parent=1 // pred_check_branch
      %37 = sbr.rel (0) target = $region17
    $region16: #{tpu_custom_call.1} parent=1 // pred_region
      %39 = dma.done [#allocation6], 256
    $region17: #{tpu_custom_call.1} parent=1 // pred_fallthru
      _
    %v40 = vld [vmem:[#allocation2] sm:$0xff]
    %v41 = vld [vmem:[#allocation2 + $0x8] sm:$0xff]
    %v42 = vld [vmem:[#allocation2 + $0x10] sm:$0xff]
    %v43 = vld [vmem:[#allocation2 + $0x18] sm:$0xff]
    %44 = vrot.lane.b32.xlu0 %v40, 120
    %v45 = vpop.permute.xlu0 %44
    %46 = vrot.lane.b32.xlu0 %v41, 120
    %v47 = vpop.permute.xlu0 %46
    %48 = vrot.lane.b32.xlu0 %v42, 120
    %v49 = vpop.permute.xlu0 %48
    %50 = vrot.lane.b32.xlu0 %v43, 120
    %v51 = vpop.permute.xlu0 %50
    %v52 = vlaneseq
    %v53 = vand.u32 %v52, 127
    %vm54 = vcmp.lt.s32.totalorder %v53, 120
    %v55 = vsel %vm54, %v49, %v51
    %v56 = vsel %vm54, %v47, %v49
    %v57 = vsel %vm54, %v45, %v47
    %v58 = vsel %vm54, %v51, %v45
    %v59 = vsub.f32 %v57, %v40
    %v60 = vsub.f32 %v56, %v41
    %v61 = vsub.f32 %v55, %v42
    %v62 = vsub.f32 %v58, %v43
    %v63 = vmul.f32 %v59, %v59
    %v64 = vmul.f32 %v60, %v60
    %v65 = vmul.f32 %v61, %v61
    %v66 = vmul.f32 %v62, %v62
    %v67 = vld [vmem:[#allocation5] ss:$4 sm:$0xf]
    %v69 = vperm.slane %v67, 0
    %v70 = vperm.slane %v67, 1
    %v71 = vperm.slane %v67, 2
    %v72 = vperm.slane %v67, 3
    %v77 = vmul.f32 %v63, %v69
    %v78 = vmul.f32 %v64, %v70
    %v79 = vmul.f32 %v65, %v71
    %v80 = vmul.f32 %v66, %v72
    %v81 = vrot.slane %v77, 4
    %v82 = vadd.f32 %v77, %v81
    %v83 = vrot.slane %v82, 2
    %v84 = vadd.f32 %v82, %v83
    %v85 = vrot.slane %v84, 1
    %v86 = vadd.f32 %v84, %v85
    %v87 = vrot.slane %v78, 4
    %v88 = vadd.f32 %v78, %v87
    %v89 = vrot.slane %v88, 2
    %v90 = vadd.f32 %v88, %v89
    %v91 = vrot.slane %v90, 1
    %v92 = vadd.f32 %v90, %v91
    %v93 = vrot.slane %v79, 4
    %v94 = vadd.f32 %v79, %v93
    %v95 = vrot.slane %v94, 2
    %v96 = vadd.f32 %v94, %v95
    %v97 = vrot.slane %v96, 1
    %v98 = vadd.f32 %v96, %v97
    %v99 = vrot.slane %v80, 4
    %v100 = vadd.f32 %v80, %v99
    %v101 = vrot.slane %v100, 2
    %v102 = vadd.f32 %v100, %v101
    %v103 = vrot.slane %v102, 1
    %v104 = vadd.f32 %v102, %v103
    %vm105 = vcmask 1040384
    %v106 = vsel %vm105, %v86, 0.0
    %v107 = vsel %vm105, %v92, 0.0
    %v108 = vadd.f32 %v106, %v107
    %v109 = vsel %vm105, %v98, 0.0
    %v110 = vadd.f32 %v108, %v109
    %v111 = vsel %vm105, %v104, 0.0
    %v112 = vadd.f32 %v110, %v111
    %113 = vadd.xlane.f32.xlu0 %v112
    %v114 = vpop.xlane.xlu0 %113
    %v115 = vrot.slane %v114, 4
    %v116 = vadd.f32 %v114, %v115
    %v117 = vrot.slane %v116, 2
    %v118 = vadd.f32 %v116, %v117
    %v119 = vrot.slane %v118, 1
    %v120 = vadd.f32 %v118, %v119
    %s121 = vtos %v120
    %s122 = scalar_lea.smem [#allocation7], 0
    %123 = sst [smem:[%s122]] %s121
    %124 = vrot.lane.b32.xlu0 %v40, 64
    %v125 = vpop.permute.xlu0 %124
    %126 = vrot.lane.b32.xlu0 %v41, 64
    %v127 = vpop.permute.xlu0 %126
    %128 = vrot.lane.b32.xlu0 %v42, 64
    %v129 = vpop.permute.xlu0 %128
    %130 = vrot.lane.b32.xlu0 %v43, 64
    %v131 = vpop.permute.xlu0 %130
    %vm132 = vcmp.lt.s32.totalorder %v53, 64
    %v133 = vsel %vm132, %v129, %v131
    %v134 = vsel %vm132, %v127, %v129
    %v135 = vsel %vm132, %v125, %v127
    %v136 = vsel %vm132, %v131, %v125
    %v137 = vsub.f32 %v135, %v40
    %v138 = vsub.f32 %v134, %v41
    %v139 = vsub.f32 %v133, %v42
    %v140 = vsub.f32 %v136, %v43
    %v141 = vmul.f32 %v137, %v137
    %v142 = vmul.f32 %v138, %v138
    %v143 = vmul.f32 %v139, %v139
    %v144 = vmul.f32 %v140, %v140
    %s145 = scalar_lea.vmem [#allocation5], 1
    %v146 = vld [vmem:[%s145] ss:$4 sm:$0xf]
    %v148 = vperm.slane %v146, 0
    %v149 = vperm.slane %v146, 1
    %v150 = vperm.slane %v146, 2
    %v151 = vperm.slane %v146, 3
    %v156 = vmul.f32 %v141, %v148
    %v157 = vmul.f32 %v142, %v149
    %v158 = vmul.f32 %v143, %v150
    %v159 = vmul.f32 %v144, %v151
    %v160 = vrot.slane %v156, 4
    %v161 = vadd.f32 %v156, %v160
    %v162 = vrot.slane %v161, 2
    %v163 = vadd.f32 %v161, %v162
    %v164 = vrot.slane %v163, 1
    %v165 = vadd.f32 %v163, %v164
    %v166 = vrot.slane %v157, 4
    %v167 = vadd.f32 %v157, %v166
    %v168 = vrot.slane %v167, 2
    %v169 = vadd.f32 %v167, %v168
    %v170 = vrot.slane %v169, 1
    %v171 = vadd.f32 %v169, %v170
    %v172 = vrot.slane %v158, 4
    %v173 = vadd.f32 %v158, %v172
    %v174 = vrot.slane %v173, 2
    %v175 = vadd.f32 %v173, %v174
    %v176 = vrot.slane %v175, 1
    %v177 = vadd.f32 %v175, %v176
    %v178 = vrot.slane %v159, 4
    %v179 = vadd.f32 %v159, %v178
    %v180 = vrot.slane %v179, 2
    %v181 = vadd.f32 %v179, %v180
    %v182 = vrot.slane %v181, 1
    %v183 = vadd.f32 %v181, %v182
    %v184 = vsel %vm105, %v165, 0.0
    %v185 = vsel %vm105, %v171, 0.0
    %v186 = vadd.f32 %v184, %v185
    %v187 = vsel %vm105, %v177, 0.0
    %v188 = vadd.f32 %v186, %v187
    %v189 = vsel %vm105, %v183, 0.0
    %v190 = vadd.f32 %v188, %v189
    %191 = vadd.xlane.f32.xlu0 %v190
    %v192 = vpop.xlane.xlu0 %191
    %v193 = vrot.slane %v192, 4
    %v194 = vadd.f32 %v192, %v193
    %v195 = vrot.slane %v194, 2
    %v196 = vadd.f32 %v194, %v195
    %v197 = vrot.slane %v196, 1
    %v198 = vadd.f32 %v196, %v197
    %s199 = vtos %v198
    %s200 = scalar_lea.smem [#allocation7], 1
    %201 = sst [smem:[%s200]] %s199
    %202 = vrot.lane.b32.xlu0 %v40, 127
    %v203 = vpop.permute.xlu0 %202
    %204 = vrot.lane.b32.xlu0 %v41, 127
    %v205 = vpop.permute.xlu0 %204
    %206 = vrot.lane.b32.xlu0 %v42, 127
    %v207 = vpop.permute.xlu0 %206
    %208 = vrot.lane.b32.xlu0 %v43, 127
    %v209 = vpop.permute.xlu0 %208
    %vm210 = vcmp.lt.s32.totalorder %v53, 127
    %v211 = vsel %vm210, %v207, %v209
    %v212 = vsel %vm210, %v205, %v207
    %v213 = vsel %vm210, %v203, %v205
    %v214 = vsel %vm210, %v209, %v203
    %v215 = vsub.f32 %v213, %v40
    %v216 = vsub.f32 %v212, %v41
    %v217 = vsub.f32 %v211, %v42
    %v218 = vsub.f32 %v214, %v43
    %v219 = vmul.f32 %v215, %v215
    %v220 = vmul.f32 %v216, %v216
    %v221 = vmul.f32 %v217, %v217
    %v222 = vmul.f32 %v218, %v218
    %s223 = scalar_lea.vmem [#allocation5], 2
    %v224 = vld [vmem:[%s223] ss:$4 sm:$0xf]
    %v226 = vperm.slane %v224, 0
    %v227 = vperm.slane %v224, 1
    %v228 = vperm.slane %v224, 2
    %v229 = vperm.slane %v224, 3
    %v234 = vmul.f32 %v219, %v226
    %v235 = vmul.f32 %v220, %v227
    %v236 = vmul.f32 %v221, %v228
    %v237 = vmul.f32 %v222, %v229
    %v238 = vrot.slane %v234, 4
    %v239 = vadd.f32 %v234, %v238
    %v240 = vrot.slane %v239, 2
    %v241 = vadd.f32 %v239, %v240
    %v242 = vrot.slane %v241, 1
    %v243 = vadd.f32 %v241, %v242
    %v244 = vrot.slane %v235, 4
    %v245 = vadd.f32 %v235, %v244
    %v246 = vrot.slane %v245, 2
    %v247 = vadd.f32 %v245, %v246
    %v248 = vrot.slane %v247, 1
    %v249 = vadd.f32 %v247, %v248
    %v250 = vrot.slane %v236, 4
    %v251 = vadd.f32 %v236, %v250
    %v252 = vrot.slane %v251, 2
    %v253 = vadd.f32 %v251, %v252
    %v254 = vrot.slane %v253, 1
    %v255 = vadd.f32 %v253, %v254
    %v256 = vrot.slane %v237, 4
    %v257 = vadd.f32 %v237, %v256
    %v258 = vrot.slane %v257, 2
    %v259 = vadd.f32 %v257, %v258
    %v260 = vrot.slane %v259, 1
    %v261 = vadd.f32 %v259, %v260
    %v262 = vsel %vm105, %v243, 0.0
    %v263 = vsel %vm105, %v249, 0.0
    %v264 = vadd.f32 %v262, %v263
    %v265 = vsel %vm105, %v255, 0.0
    %v266 = vadd.f32 %v264, %v265
    %v267 = vsel %vm105, %v261, 0.0
    %v268 = vadd.f32 %v266, %v267
    %269 = vadd.xlane.f32.xlu0 %v268
    %v270 = vpop.xlane.xlu0 %269
    %v271 = vrot.slane %v270, 4
    %v272 = vadd.f32 %v270, %v271
    %v273 = vrot.slane %v272, 2
    %v274 = vadd.f32 %v272, %v273
    %v275 = vrot.slane %v274, 1
    %v276 = vadd.f32 %v274, %v275
    %s277 = vtos %v276
    %s278 = scalar_lea.smem [#allocation7], 2
    %279 = sst [smem:[%s278]] %s277
    // Predicated region
    $region18: #{tpu_custom_call.1} parent=1 // pred_check
      _
    $region19: #{tpu_custom_call.1} parent=1 // pred_check_branch
      %281 = sbr.rel (0) target = $region21
    $region20: #{tpu_custom_call.1} parent=1 // pred_region
      %283 = vsyncadd [#allocation4], 0
      %s285 = sshll.u32 %s2, 4
      %s286 = int_to_ptr.hbm [resolvable:$true] %s285
      %288 = dma.smem_to_hbm [#allocation7], 16, %s286, [#allocation4]
    $region21: #{tpu_custom_call.1} parent=1 // pred_fallthru
      _
    // Predicated region
    $region22: #{tpu_custom_call.1} parent=1 // pred_check
      _
    $region23: #{tpu_custom_call.1} parent=1 // pred_check_branch
      %290 = sbr.rel (0) target = $region25
    $region24: #{tpu_custom_call.1} parent=1 // pred_region
      %292 = dma.done [#allocation4], 16
    $region25: #{tpu_custom_call.1} parent=1 // pred_fallthru
      _
    %293 = sfence
    %294 = vsyncpa [#allocation3], 1
    %295 = vsyncpa [#allocation6], 1
    %296 = vsyncpa [#allocation4], 1

</llo_original>
